<compile_context>
chip_gen: v7x
topology: tpu7x:2x2x1
jax: 0.10.0
libtpu: 0.0.40
codegen_flags: <defaults>
</compile_context>

<pallas_src>
import functools

import numpy as np
import jax
import jax.numpy as jnp
from jax import lax
from jax.experimental import pallas as pl
from jax.experimental.pallas import tpu as pltpu

H_PAD = 128  # lane-aligned slab width per projection output


# ---------------------------------------------------------------------------
# Kernel 1: fused, lane-aligned K|V projection, tiled over N.
# ---------------------------------------------------------------------------
def kv_proj_kernel(x_ref, w_kv_ref, b_kv_ref, kv_ref):
    """kv_tile = x_tile @ [Wk | Wv] + [bk | bv]  (f32 accumulation)."""
    acc = jnp.dot(x_ref[...], w_kv_ref[...],
                  preferred_element_type=jnp.float32) + b_kv_ref[...]
    kv_ref[...] = acc.astype(kv_ref.dtype)


# ---------------------------------------------------------------------------
# Kernel 2: per-scene ego attention, tiled over B (megacore-parallel).
# ---------------------------------------------------------------------------
def attention_kernel(x_ego_ref, wq_ref, bq_ref, batches_ref, kv_ref,
                     values_ref, attn_ref, *, scale, tile_b):
    # Q projection for the TB ego rows only (not all N nodes); fold the
    # 1/sqrt(hidden) softmax temperature into this small [TB, H_PAD] result.
    q_ego = (jnp.dot(x_ego_ref[...].astype(wq_ref.dtype), wq_ref[...],
                     preferred_element_type=jnp.float32)
             + bq_ref[...]) * scale                                  # [TB, H_PAD] f32

    # Lane-aligned, zero-cost slab views of the fused projection.
    k = kv_ref[:, 0:H_PAD]                                           # [N, H_PAD]
    v = kv_ref[:, H_PAD:2 * H_PAD]                                   # [N, H_PAD]

    # scores[b, j] = <q_ego[b], k[j]> — bf16 operands, f32 accumulation.
    scores = lax.dot_general(q_ego.astype(k.dtype), k,
                             (((1,), (1,)), ((), ())),
                             preferred_element_type=jnp.float32)     # [TB, N]

    # Scene membership of each node for this B tile (-1 = padded node).
    b_col = (pl.program_id(0) * tile_b
             + lax.broadcasted_iota(jnp.int32, (tile_b, 1), 0))      # [TB, 1]
    member = batches_ref[...] == b_col                               # [TB, N]

    # Masked softmax over the node axis.  Non-members get -1e30, which
    # underflows to exactly 0 after the exp, so no second select is needed.
    masked = jnp.where(member, scores, jnp.float32(-1e30))
    m = jnp.max(masked, axis=1, keepdims=True)
    e = jnp.exp(masked - m)
    denom = jnp.sum(e, axis=1, keepdims=True)
    safe = jnp.where(denom > 0.0, denom, jnp.float32(1.0))
    attn = e * pl.reciprocal(safe, approx=True)                      # [TB, N]

    attn_ref[...] = attn
    values_ref[...] = jnp.dot(attn.astype(v.dtype), v,
                              preferred_element_type=jnp.float32)    # [TB, H_PAD]


# ---------------------------------------------------------------------------
# Wrapper
# ---------------------------------------------------------------------------
def _round_up(v, m):
    return ((v + m - 1) // m) * m


def _pick_n_tile(n_pad):
    for t in (1024, 512, 256, 128):
        if n_pad % t == 0:
            return t
    return 128


def _vmem_limit_bytes(n_pad, tile_b, input_dim):
    """Shape-derived VMEM budget, clamped to the generation's physical VMEM."""
    kv_bytes = n_pad * 2 * H_PAD * 2                  # bf16 K|V, resident
    batches_bytes = n_pad * 4
    attn_blk = tile_b * n_pad * 4
    small = (tile_b * input_dim + input_dim * H_PAD + H_PAD
             + tile_b * H_PAD) * 4
    est = 2 * (kv_bytes + batches_bytes + attn_blk + small)   # double-buffering
    est += 8 * tile_b * n_pad * 4                             # [TB, N] temporaries
    try:
        cap = int(0.75 * pltpu.get_tpu_info().vmem_capacity_bytes)
    except Exception:                                         # pragma: no cover
        cap = 48 * 1024 * 1024                                # v7x-safe default
    return int(min(max(est, 16 * 1024 * 1024), cap))


def global_graph_forward(x, batches, ego_idx, params, num_batches, hidden_dim,
                         mxu_dtype=jnp.bfloat16):
    """Pallas-backed forward of GlobalGraph.

    Returns (values [num_batches, hidden], attentions: list of per-scene
    softmax vectors), matching the PyTorch reference.  `ego_idx` is accepted
    but unused, exactly like the reference forward (it only casts it to long).
    Set mxu_dtype=jnp.float32 for closer parity with an f32 reference.
    """
    del ego_idx  # unused in the reference forward
    N, input_dim = x.shape
    H = params["wq"].shape[1]
    assert H <= H_PAD

    TILE_B = 8
    N_pad = max(_round_up(N, 128), 128)
    B_pad = max(_round_up(num_batches, TILE_B), TILE_B)

    # ---- host-side preprocessing (batches is host-visible) ------------------
    batches_np = np.asarray(batches, dtype=np.int32)
    first_idx = np.zeros((B_pad,), np.int32)
    for b in range(num_batches):
        members = np.nonzero(batches_np == b)[0]
        if members.size:
            first_idx[b] = int(members[0])

    # Lane-aligned parameter slabs: each projection owns a full 128-lane slab.
    w_kv = np.zeros((input_dim, 2 * H_PAD), np.float32)
    b_kv = np.zeros((1, 2 * H_PAD), np.float32)
    w_kv[:, 0:H] = np.asarray(params["wk"], np.float32)
    w_kv[:, H_PAD:H_PAD + H] = np.asarray(params["wv"], np.float32)
    b_kv[:, 0:H] = np.asarray(params["bk"], np.float32).reshape(1, H)
    b_kv[:, H_PAD:H_PAD + H] = np.asarray(params["bv"], np.float32).reshape(1, H)
    wq = np.zeros((input_dim, H_PAD), np.float32)
    bq = np.zeros((1, H_PAD), np.float32)
    wq[:, 0:H] = np.asarray(params["wq"], np.float32)
    bq[:, 0:H] = np.asarray(params["bq"], np.float32).reshape(1, H)

    x_pad = jnp.zeros((N_pad, input_dim), jnp.float32).at[:N, :].set(
        jnp.asarray(x, jnp.float32))
    batches_pad = jnp.full((1, N_pad), -1, jnp.int32).at[0, :N].set(
        jnp.asarray(batches_np))
    x_ego = jnp.take(x_pad, jnp.asarray(first_idx), axis=0)       # [B_pad, I] f32

    x_in = x_pad.astype(mxu_dtype)
    w_kv_in = jnp.asarray(w_kv).astype(mxu_dtype)
    b_kv_in = jnp.asarray(b_kv)
    wq_in = jnp.asarray(wq).astype(mxu_dtype)
    bq_in = jnp.asarray(bq)

    # ---- kernel 1: fused K|V projection ------------------------------------
    TILE_N = _pick_n_tile(N_pad)
    kv = pl.pallas_call(
        kv_proj_kernel,
        out_shape=jax.ShapeDtypeStruct((N_pad, 2 * H_PAD), mxu_dtype),
        grid=(N_pad // TILE_N,),
        in_specs=[pl.BlockSpec((TILE_N, input_dim), lambda i: (i, 0)),
                  pl.BlockSpec((input_dim, 2 * H_PAD), lambda i: (0, 0)),
                  pl.BlockSpec((1, 2 * H_PAD), lambda i: (0, 0))],
        out_specs=pl.BlockSpec((TILE_N, 2 * H_PAD), lambda i: (i, 0)),
        compiler_params=pltpu.CompilerParams(
            dimension_semantics=("parallel",)),
    )(x_in, w_kv_in, b_kv_in)

    # ---- kernel 2: per-scene ego attention ----------------------------------
    # TODO(synk): the reference scales by sqrt(vn_config['hidden_dim']); here
    # the caller-supplied hidden_dim plays that role.
    scale = float(1.0 / np.sqrt(float(hidden_dim)))
    kernel = functools.partial(attention_kernel, scale=scale, tile_b=TILE_B)
    values_p, attn_p = pl.pallas_call(
        kernel,
        out_shape=(jax.ShapeDtypeStruct((B_pad, H_PAD), jnp.float32),
                   jax.ShapeDtypeStruct((B_pad, N_pad), jnp.float32)),
        grid=(B_pad // TILE_B,),
        in_specs=[pl.BlockSpec((TILE_B, input_dim), lambda b: (b, 0)),   # x_ego
                  pl.BlockSpec((input_dim, H_PAD), lambda b: (0, 0)),    # wq
                  pl.BlockSpec((1, H_PAD), lambda b: (0, 0)),            # bq
                  pl.BlockSpec((1, N_pad), lambda b: (0, 0)),            # batches
                  pl.BlockSpec((N_pad, 2 * H_PAD), lambda b: (0, 0))],   # kv
        out_specs=(pl.BlockSpec((TILE_B, H_PAD), lambda b: (b, 0)),
                   pl.BlockSpec((TILE_B, N_pad), lambda b: (b, 0))),
        compiler_params=pltpu.CompilerParams(
            dimension_semantics=("parallel",),
            vmem_limit_bytes=_vmem_limit_bytes(N_pad, TILE_B, input_dim)),
    )(x_ego, wq_in, bq_in, batches_pad, kv)

    values = values_p[:num_batches, :H]

    # Single device->host transfer, then numpy slicing for the ragged
    # per-scene attention list (no per-scene device gathers / syncs).
    attn_np = np.asarray(attn_p)[:num_batches, :N]
    attentions = [attn_np[b][batches_np == b] for b in range(num_batches)]
    return values, attentions


# ---------------------------------------------------------------------------
# Pure-numpy reference (mirrors the PyTorch module)
# ---------------------------------------------------------------------------
def _reference(x, batches, params, num_batches, hidden_dim):
    x = np.asarray(x, np.float64)
    Q = x @ np.asarray(params["wq"], np.float64) + np.asarray(params["bq"], np.float64)
    K = x @ np.asarray(params["wk"], np.float64) + np.asarray(params["bk"], np.float64)
    V = x @ np.asarray(params["wv"], np.float64) + np.asarray(params["bv"], np.float64)
    b_np = np.asarray(batches)
    vals, attns = [], []
    for b in range(num_batches):
        sel = b_np == b
        qb, kb, vb = Q[sel], K[sel], V[sel]
        s = qb @ kb.T / np.sqrt(float(hidden_dim))
        s = s - s.max(axis=1, keepdims=True)
        p = np.exp(s)
        p = p / p.sum(axis=1, keepdims=True)
        vals.append((p @ vb)[0])
        attns.append(p[0])
    return np.stack(vals, 0), attns


if __name__ == "__main__":
    key = jax.random.PRNGKey(0)
    N, INPUT, HIDDEN = 8, 32, 16            # module defaults: input=32, hidden=16
    ks = jax.random.split(key, 8)

    x = jax.random.normal(ks[0], (N, INPUT), dtype=jnp.float32)

    def linear_init(kw, kb, fan_in, fan_out):
        # Deterministic stand-in for torch Linear init (uniform +/- 1/sqrt(fan_in)).
        bound = 1.0 / np.sqrt(fan_in)
        w = jax.random.uniform(kw, (fan_in, fan_out), jnp.float32, -bound, bound)
        b = jax.random.uniform(kb, (1, fan_out), jnp.float32, -bound, bound)
        return w, b

    wq, bq = linear_init(ks[1], ks[2], INPUT, HIDDEN)
    wk, bk = linear_init(ks[3], ks[4], INPUT, HIDDEN)
    wv, bv = linear_init(ks[5], ks[6], INPUT, HIDDEN)
    params = dict(wq=wq, wk=wk, wv=wv, bq=bq, bk=bk, bv=bv)

    # Two "scenes" worth of nodes (non-contiguous membership is fine).
    batches = jnp.array([0, 0, 0, 1, 1, 1, 1, 0], dtype=jnp.int32)
    ego_idx = jnp.array([0, 3], dtype=jnp.int32)   # accepted, unused (as in reference)
    num_batches = int(np.asarray(batches).max()) + 1

    # f32 path: check against the numpy reference.
    values_f32, attns_f32 = global_graph_forward(
        x, batches, ego_idx, params, num_batches, hidden_dim=HIDDEN,
        mxu_dtype=jnp.float32)
    jax.block_until_ready(values_f32)
    ref_vals, ref_attns = _reference(x, batches, params, num_batches, HIDDEN)
    assert np.allclose(np.asarray(values_f32), ref_vals, atol=1e-2, rtol=1e-2)
    for a, r in zip(attns_f32, ref_attns):
        assert a.shape == r.shape
        assert np.allclose(a, r, atol=1e-2, rtol=1e-2)

    # Default bf16 MXU path.
    values, attentions = global_graph_forward(
        x, batches, ego_idx, params, num_batches, hidden_dim=HIDDEN)
    jax.block_until_ready(values)
    assert values.shape == (num_batches, HIDDEN)
    assert np.isfinite(np.asarray(values)).all()
    assert all(np.isfinite(a).all() for a in attentions)
    assert np.allclose(np.asarray(values), ref_vals, atol=1e-1, rtol=1e-1)
    print("KERNEL_OK")
</pallas_src>

<mosaic_0001>
module attributes {stable_mosaic.version = 11 : i64} {
  func.func @kv_proj_kernel(%arg0: i32, %arg1: memref<128x32xf32, #tpu.memory_space<vmem>>, %arg2: memref<32x256xf32, #tpu.memory_space<vmem>>, %arg3: memref<1x256xf32, #tpu.memory_space<vmem>>, %arg4: memref<128x256xf32, #tpu.memory_space<vmem>>) attributes {dimension_semantics = [#tpu.dimension_semantics<parallel>], iteration_bounds = array<i64: 1>, scalar_prefetch = 0 : i64, scratch_operands = 0 : i64, tpu.core_type = #tpu.core_type<tc>, window_params = [{transform_indices = @transform_0, window_bounds = array<i64: 128, 32>}, {pipeline_mode = #tpu.pipeline_mode<synchronous>, transform_indices = @transform_1, window_bounds = array<i64: 32, 256>}, {pipeline_mode = #tpu.pipeline_mode<synchronous>, transform_indices = @transform_2, window_bounds = array<i64: 1, 256>}, {transform_indices = @transform_3, window_bounds = array<i64: 128, 256>}]} {
    %c0 = arith.constant 0 : index
    %c0_0 = arith.constant 0 : index
    %0 = vector.load %arg1[%c0, %c0_0] : memref<128x32xf32, #tpu.memory_space<vmem>>, vector<128x32xf32>
    %c0_1 = arith.constant 0 : index
    %c0_2 = arith.constant 0 : index
    %1 = vector.load %arg2[%c0_1, %c0_2] : memref<32x256xf32, #tpu.memory_space<vmem>>, vector<32x256xf32>
    %cst = arith.constant dense<0.000000e+00> : vector<128x256xf32>
    %2 = tpu.matmul %0, %1, %cst {dimension_numbers = #tpu.dot_dimension_numbers<[1], [0], [0], [1], [0, 0, 1, 1], [], []>} : vector<128x32xf32>, vector<32x256xf32>, vector<128x256xf32> -> vector<128x256xf32>
    %c0_3 = arith.constant 0 : index
    %c0_4 = arith.constant 0 : index
    %3 = vector.load %arg3[%c0_3, %c0_4] : memref<1x256xf32, #tpu.memory_space<vmem>>, vector<1x256xf32>
    %4 = vector.broadcast %3 : vector<1x256xf32> to vector<128x256xf32>
    %5 = arith.addf %2, %4 : vector<128x256xf32>
    %c0_5 = arith.constant 0 : index
    %c0_6 = arith.constant 0 : index
    %6 = vector.load %arg4[%c0_5, %c0_6] : memref<128x256xf32, #tpu.memory_space<vmem>>, vector<128x256xf32>
    tpu.vector_store %arg4[%c0_5, %c0_6], %5 {strides = array<i32>} : memref<128x256xf32, #tpu.memory_space<vmem>>, vector<128x256xf32>,
    return
  }
  func.func @transform_0(%arg0: i32) -> (i32, i32) {
    %c0_i32 = arith.constant 0 : i32
    %c0_i32_0 = arith.constant 0 : i32
    return %arg0, %c0_i32 : i32, i32
  }
  func.func @transform_1(%arg0: i32) -> (i32, i32) {
    %c0_i32 = arith.constant 0 : i32
    %c0_i32_0 = arith.constant 0 : i32
    %c0_i32_1 = arith.constant 0 : i32
    return %c0_i32, %c0_i32_0 : i32, i32
  }
  func.func @transform_2(%arg0: i32) -> (i32, i32) {
    %c0_i32 = arith.constant 0 : i32
    %c0_i32_0 = arith.constant 0 : i32
    %c0_i32_1 = arith.constant 0 : i32
    return %c0_i32, %c0_i32_0 : i32, i32
  }
  func.func @transform_3(%arg0: i32) -> (i32, i32) {
    %c0_i32 = arith.constant 0 : i32
    %c0_i32_0 = arith.constant 0 : i32
    return %arg0, %c0_i32 : i32, i32
  }
}

</mosaic_0001>

<llo_original>
// kernel: tpu_custom_call.1
$region0: #{tpu_custom_call.1}
  #allocation0 [shape = 'u32[]', space=smem, size = 0x4, offset = 0x4, fixed_abs, tag = 'smem constant byte address 0x4 - core index']
  #allocation1 [shape = 'u32[144,128]{1,0:T(1,128)}', space=vmem, size = 0x12000, scoped, tag = 'internal scratch']
  %s0 = inlined_call_operand.vmem [shape: f32[128,32], index: 0, kind: input, shape index: {}]
  %s1 = inlined_call_operand.vmem [shape: f32[32,256], index: 1, kind: input, shape index: {}]
  %s2 = inlined_call_operand.vmem [shape: f32[1,256], index: 2, kind: input, shape index: {}]
  %s3 = inlined_call_operand.hbm [shape: f32[128,256], index: 3, kind: output, shape index: {}]
  %s4 = sld [smem:[#allocation0]]
  $region22: #{tpu_custom_call.1} parent=0
    _
  %s6 = ssub.s32 1, %s4
  %s7 = scalar_select 0, %s6, %s4
  $region1: #{tpu_custom_call.1} parent=0
    #allocation2 [shape = 'u8[131072]{0}', space=vmem, size = 0x20000, scoped, tag = 'output window, operand 0, single buffered']
    #allocation3 [shape = 's32[1]{0}', space=sflag, size = 0x4, scoped, tag = 'scoped memory for tpu_custom_call.1']
    %8 = vsyncpa [#allocation3], 0
    // Predicated region
    $region2: #{tpu_custom_call.1} parent=1 // pred_check
      _
    $region3: #{tpu_custom_call.1} parent=1 // pred_check_branch
      %10 = sbr.rel (0) target = $region5
    $region4: #{tpu_custom_call.1} parent=1 // pred_region
      _
    $region5: #{tpu_custom_call.1} parent=1 // pred_fallthru
      _
    // Predicated region
    $region6: #{tpu_custom_call.1} parent=1 // pred_check
      _
    $region7: #{tpu_custom_call.1} parent=1 // pred_check_branch
      %12 = sbr.rel (0) target = $region9
    $region8: #{tpu_custom_call.1} parent=1 // pred_region
      _
    $region9: #{tpu_custom_call.1} parent=1 // pred_fallthru
      _
    // Predicated region
    $region10: #{tpu_custom_call.1} parent=1 // pred_check
      _
    $region11: #{tpu_custom_call.1} parent=1 // pred_check_branch
      %14 = sbr.rel (0) target = $region13
    $region12: #{tpu_custom_call.1} parent=1 // pred_region
      _
    $region13: #{tpu_custom_call.1} parent=1 // pred_fallthru
      _
    %v15 = vld [vmem:[%s0] sm:$0xff]
    %v16 = vld [vmem:[%s0 + $0x8] sm:$0xff]
    %v17 = vld [vmem:[%s0 + $0x10] sm:$0xff]
    %v18 = vld [vmem:[%s0 + $0x18] sm:$0xff]
    %v19 = vld [vmem:[%s0 + $0x20] sm:$0xff]
    %v20 = vld [vmem:[%s0 + $0x28] sm:$0xff]
    %v21 = vld [vmem:[%s0 + $0x30] sm:$0xff]
    %v22 = vld [vmem:[%s0 + $0x38] sm:$0xff]
    %v23 = vld [vmem:[%s0 + $0x40] sm:$0xff]
    %v24 = vld [vmem:[%s0 + $0x48] sm:$0xff]
    %v25 = vld [vmem:[%s0 + $0x50] sm:$0xff]
    %v26 = vld [vmem:[%s0 + $0x58] sm:$0xff]
    %v27 = vld [vmem:[%s0 + $0x60] sm:$0xff]
    %v28 = vld [vmem:[%s0 + $0x68] sm:$0xff]
    %v29 = vld [vmem:[%s0 + $0x70] sm:$0xff]
    %v30 = vld [vmem:[%s0 + $0x78] sm:$0xff]
    %v31 = vld [vmem:[%s1] sm:$0xff]
    %v32 = vld [vmem:[%s1 + $0x8] sm:$0xff]
    %v33 = vld [vmem:[%s1 + $0x10] sm:$0xff]
    %v34 = vld [vmem:[%s1 + $0x18] sm:$0xff]
    %v35 = vld [vmem:[%s1 + $0x20] sm:$0xff]
    %v36 = vld [vmem:[%s1 + $0x28] sm:$0xff]
    %v37 = vld [vmem:[%s1 + $0x30] sm:$0xff]
    %v38 = vld [vmem:[%s1 + $0x38] sm:$0xff]
    %v39 = vld [vmem:[%s2] sm:$0x3]
    %v41 = vlaneseq
    %v42 = vshrl.u32 %v41, 7
    %v43 = vsub.s32 0, %v42
    %v44 = vrot.slane %v39, %v43
    %v45 = vlaneseq
    %v46 = vshrl.u32 %v45, 7
    %v47 = vsub.s32 1, %v46
    %v48 = vrot.slane %v39, %v47
    %vm51 = vcmask 261120
    %v53 = vsel %vm51, %v15, 0
    %v56 = vsel %vm51, %v16, 0
    %v59 = vsel %vm51, %v17, 0
    %v62 = vsel %vm51, %v18, 0
    %v65 = vsel %vm51, %v19, 0
    %v68 = vsel %vm51, %v20, 0
    %v71 = vsel %vm51, %v21, 0
    %v74 = vsel %vm51, %v22, 0
    %v77 = vsel %vm51, %v23, 0
    %v80 = vsel %vm51, %v24, 0
    %v83 = vsel %vm51, %v25, 0
    %v86 = vsel %vm51, %v26, 0
    %v89 = vsel %vm51, %v27, 0
    %v92 = vsel %vm51, %v28, 0
    %v95 = vsel %vm51, %v29, 0
    %v98 = vsel %vm51, %v30, 0
    %100 = vmatprep.subr.mxu0 %v32
    %101 = vmatpush1.msra.mxu0 %v31
    %102 = vmatprep.subr.mxu0 %v34
    %103 = vmatpush1.msra.mxu0 %v33
    %104 = vmatprep.subr.mxu0 %v36
    %105 = vmatpush1.msra.mxu0 %v35
    %106 = vmatprep.subr.mxu0 %v38
    %107 = vmatpush1.msra.mxu0 %v37
    %108 = vmatprep.subr.mxu0 0.0
    %109 = vmatpush1.msra.mxu0 0.0
    %110 = vmatprep.subr.mxu0 0.0
    %111 = vmatpush1.msra.mxu0 0.0
    %112 = vmatprep.subr.mxu0 0.0
    %113 = vmatpush1.msra.mxu0 0.0
    %114 = vmatprep.subr.mxu0 0.0
    %115 = vmatpush1.msra.mxu0 0.0
    %116 = vmatprep.subr.mxu0 0.0
    %117 = vmatpush1.msra.mxu0 0.0
    %118 = vmatprep.subr.mxu0 0.0
    %119 = vmatpush1.msra.mxu0 0.0
    %120 = vmatprep.subr.mxu0 0.0
    %121 = vmatpush1.msra.mxu0 0.0
    %122 = vmatprep.subr.mxu0 0.0
    %123 = vmatpush1.msra.mxu0 0.0
    %124 = vmatprep.subr.mxu0 0.0
    %125 = vmatpush1.msra.mxu0 0.0
    %126 = vmatprep.subr.mxu0 0.0
    %127 = vmatpush1.msra.mxu0 0.0
    %128 = vmatprep.subr.mxu0 0.0
    %129 = vmatpush1.msra.mxu0 0.0
    %130 = vmatprep.subr.mxu0 0.0
    %131 = vmatpush1.msra.mxu0 0.0
    %132 = vmatprep.subr.mxu0 0.0
    %133 = vmatpush1.msra.mxu0 0.0
    %134 = vmatprep.subr.mxu0 0.0
    %135 = vmatpush1.msra.mxu0 0.0
    %136 = vmatprep.subr.mxu0 0.0
    %137 = vmatpush1.msra.mxu0 0.0
    %138 = vmatprep.subr.mxu0 0.0
    %139 = vmatpush1.msra.mxu0 0.0
    %140 = vmatprep.subr.mxu0 0.0
    %141 = vmatpush1.msra.mxu0 0.0
    %142 = vmatprep.subr.mxu0 0.0
    %143 = vmatpush1.msra.mxu0 0.0
    %144 = vmatprep.subr.mxu0 0.0
    %145 = vmatpush1.msra.mxu0 0.0
    %146 = vmatprep.subr.mxu0 0.0
    %147 = vmatpush1.msra.mxu0 0.0
    %148 = vmatprep.subr.mxu0 0.0
    %149 = vmatpush1.msra.mxu0 0.0
    %150 = vmatprep.subr.mxu0 0.0
    %151 = vmatpush1.msra.mxu0 0.0
    %152 = vmatprep.subr.mxu0 0.0
    %153 = vmatpush1.msra.mxu0 0.0
    %154 = vmatprep.subr.mxu0 0.0
    %155 = vmatpush1.msra.mxu0 0.0
    %156 = vmatprep.subr.mxu0 0.0
    %157 = vmatpush1.msra.mxu0 0.0
    %158 = vmatprep.subr.mxu0 0.0
    %159 = vmatpush1.msra.mxu0 0.0
    %160 = vmatprep.subr.mxu0 0.0
    %161 = vmatpush1.msra.mxu0 0.0
    %162 = vmatprep.subr.mxu0 0.0
    %163 = vmatpush1.msra.mxu0 0.0
    %164 = vmatprep.mubr.f32.mxu0 0.0
    %165 = vmatmul.mubr.f32.gmra.mrb[0].mxu0 %v53
    %v166 = vpop.f32.mrb[0].mxu0
    %v167 = vadd.f32 %v44, %v166
    %v168 = vpop.f32.mrb[0].mxu0
    %v169 = vadd.f32 %v48, %v168
    %170 = vmatprep.mubr.f32.mxu0 0.0
    %171 = vmatmul.mubr.f32.gmra.mrb[0].mxu0 %v56
    %v172 = vpop.f32.mrb[0].mxu0
    %v173 = vadd.f32 %v44, %v172
    %v174 = vpop.f32.mrb[0].mxu0
    %v175 = vadd.f32 %v48, %v174
    %176 = vmatprep.mubr.f32.mxu0 0.0
    %177 = vmatmul.mubr.f32.gmra.mrb[0].mxu0 %v59
    %v178 = vpop.f32.mrb[0].mxu0
    %v179 = vadd.f32 %v44, %v178
    %v180 = vpop.f32.mrb[0].mxu0
    %v181 = vadd.f32 %v48, %v180
    %182 = vmatprep.mubr.f32.mxu0 0.0
    %183 = vmatmul.mubr.f32.gmra.mrb[0].mxu0 %v62
    %v184 = vpop.f32.mrb[0].mxu0
    %v185 = vadd.f32 %v44, %v184
    %v186 = vpop.f32.mrb[0].mxu0
    %v187 = vadd.f32 %v48, %v186
    %188 = vmatprep.mubr.f32.mxu0 0.0
    %189 = vmatmul.mubr.f32.gmra.mrb[0].mxu0 %v65
    %v190 = vpop.f32.mrb[0].mxu0
    %v191 = vadd.f32 %v44, %v190
    %v192 = vpop.f32.mrb[0].mxu0
    %v193 = vadd.f32 %v48, %v192
    %194 = vmatprep.mubr.f32.mxu0 0.0
    %195 = vmatmul.mubr.f32.gmra.mrb[0].mxu0 %v68
    %v196 = vpop.f32.mrb[0].mxu0
    %v197 = vadd.f32 %v44, %v196
    %v198 = vpop.f32.mrb[0].mxu0
    %v199 = vadd.f32 %v48, %v198
    %200 = vmatprep.mubr.f32.mxu0 0.0
    %201 = vmatmul.mubr.f32.gmra.mrb[0].mxu0 %v71
    %v202 = vpop.f32.mrb[0].mxu0
    %v203 = vadd.f32 %v44, %v202
    %v204 = vpop.f32.mrb[0].mxu0
    %v205 = vadd.f32 %v48, %v204
    %206 = vmatprep.mubr.f32.mxu0 0.0
    %207 = vmatmul.mubr.f32.gmra.mrb[0].mxu0 %v74
    %v208 = vpop.f32.mrb[0].mxu0
    %v209 = vadd.f32 %v44, %v208
    %v210 = vpop.f32.mrb[0].mxu0
    %v211 = vadd.f32 %v48, %v210
    %212 = vmatprep.mubr.f32.mxu0 0.0
    %213 = vmatmul.mubr.f32.gmra.mrb[0].mxu0 %v77
    %v214 = vpop.f32.mrb[0].mxu0
    %v215 = vadd.f32 %v44, %v214
    %v216 = vpop.f32.mrb[0].mxu0
    %v217 = vadd.f32 %v48, %v216
    %218 = vmatprep.mubr.f32.mxu0 0.0
    %219 = vmatmul.mubr.f32.gmra.mrb[0].mxu0 %v80
    %v220 = vpop.f32.mrb[0].mxu0
    %v221 = vadd.f32 %v44, %v220
    %v222 = vpop.f32.mrb[0].mxu0
    %v223 = vadd.f32 %v48, %v222
    %224 = vmatprep.mubr.f32.mxu0 0.0
    %225 = vmatmul.mubr.f32.gmra.mrb[0].mxu0 %v83
    %v226 = vpop.f32.mrb[0].mxu0
    %v227 = vadd.f32 %v44, %v226
    %v228 = vpop.f32.mrb[0].mxu0
    %v229 = vadd.f32 %v48, %v228
    %230 = vmatprep.mubr.f32.mxu0 0.0
    %231 = vmatmul.mubr.f32.gmra.mrb[0].mxu0 %v86
    %v232 = vpop.f32.mrb[0].mxu0
    %v233 = vadd.f32 %v44, %v232
    %v234 = vpop.f32.mrb[0].mxu0
    %v235 = vadd.f32 %v48, %v234
    %236 = vmatprep.mubr.f32.mxu0 0.0
    %237 = vmatmul.mubr.f32.gmra.mrb[0].mxu0 %v89
    %v238 = vpop.f32.mrb[0].mxu0
    %v239 = vadd.f32 %v44, %v238
    %v240 = vpop.f32.mrb[0].mxu0
    %v241 = vadd.f32 %v48, %v240
    %242 = vmatprep.mubr.f32.mxu0 0.0
    %243 = vmatmul.mubr.f32.gmra.mrb[0].mxu0 %v92
    %v244 = vpop.f32.mrb[0].mxu0
    %v245 = vadd.f32 %v44, %v244
    %v246 = vpop.f32.mrb[0].mxu0
    %v247 = vadd.f32 %v48, %v246
    %248 = vmatprep.mubr.f32.mxu0 0.0
    %249 = vmatmul.mubr.f32.gmra.mrb[0].mxu0 %v95
    %v250 = vpop.f32.mrb[0].mxu0
    %v251 = vadd.f32 %v44, %v250
    %v252 = vpop.f32.mrb[0].mxu0
    %v253 = vadd.f32 %v48, %v252
    %254 = vmatprep.mubr.f32.mxu0 0.0
    %255 = vmatmul.mubr.f32.gmra.mrb[0].mxu0 %v98
    %v256 = vpop.f32.mrb[0].mxu0
    %v257 = vadd.f32 %v44, %v256
    %v258 = vpop.f32.mrb[0].mxu0
    %v259 = vadd.f32 %v48, %v258
    %260 = vdwg.mxu0
    %261 = vst [vmem:[#allocation2] sm:$0xff] %v167
    %262 = vst [vmem:[#allocation2 + $0x8] sm:$0xff] %v169
    %263 = vst [vmem:[#allocation2 + $0x10] sm:$0xff] %v173
    %264 = vst [vmem:[#allocation2 + $0x18] sm:$0xff] %v175
    %265 = vst [vmem:[#allocation2 + $0x20] sm:$0xff] %v179
    %266 = vst [vmem:[#allocation2 + $0x28] sm:$0xff] %v181
    %267 = vst [vmem:[#allocation2 + $0x30] sm:$0xff] %v185
    %268 = vst [vmem:[#allocation2 + $0x38] sm:$0xff] %v187
    %269 = vst [vmem:[#allocation2 + $0x40] sm:$0xff] %v191
    %270 = vst [vmem:[#allocation2 + $0x48] sm:$0xff] %v193
    %271 = vst [vmem:[#allocation2 + $0x50] sm:$0xff] %v197
    %272 = vst [vmem:[#allocation2 + $0x58] sm:$0xff] %v199
    %273 = vst [vmem:[#allocation2 + $0x60] sm:$0xff] %v203
    %274 = vst [vmem:[#allocation2 + $0x68] sm:$0xff] %v205
    %275 = vst [vmem:[#allocation2 + $0x70] sm:$0xff] %v209
    %276 = vst [vmem:[#allocation2 + $0x78] sm:$0xff] %v211
    %277 = vst [vmem:[#allocation2 + $0x80] sm:$0xff] %v215
    %278 = vst [vmem:[#allocation2 + $0x88] sm:$0xff] %v217
    %279 = vst [vmem:[#allocation2 + $0x90] sm:$0xff] %v221
    %280 = vst [vmem:[#allocation2 + $0x98] sm:$0xff] %v223
    %281 = vst [vmem:[#allocation2 + $0xa0] sm:$0xff] %v227
    %282 = vst [vmem:[#allocation2 + $0xa8] sm:$0xff] %v229
    %283 = vst [vmem:[#allocation2 + $0xb0] sm:$0xff] %v233
    %284 = vst [vmem:[#allocation2 + $0xb8] sm:$0xff] %v235
    %285 = vst [vmem:[#allocation2 + $0xc0] sm:$0xff] %v239
    %286 = vst [vmem:[#allocation2 + $0xc8] sm:$0xff] %v241
    %287 = vst [vmem:[#allocation2 + $0xd0] sm:$0xff] %v245
    %288 = vst [vmem:[#allocation2 + $0xd8] sm:$0xff] %v247
    %289 = vst [vmem:[#allocation2 + $0xe0] sm:$0xff] %v251
    %290 = vst [vmem:[#allocation2 + $0xe8] sm:$0xff] %v253
    %291 = vst [vmem:[#allocation2 + $0xf0] sm:$0xff] %v257
    %292 = vst [vmem:[#allocation2 + $0xf8] sm:$0xff] %v259
    // Predicated region
    $region14: #{tpu_custom_call.1} parent=1 // pred_check
      _
    $region15: #{tpu_custom_call.1} parent=1 // pred_check_branch
      %294 = sbr.rel (0) target = $region17
    $region16: #{tpu_custom_call.1} parent=1 // pred_region
      %s296 = ssub.s32 4096, 4096
      %297 = vsyncadd [#allocation3], %s296
      %s298 = sshll.u32 [#allocation2], 4
      %s299 = int_to_ptr.vmem [resolvable:$true] %s298
      %304 = dma.vmem_to_hbm [thread:$0]  %s299, 4096, %s3, [#allocation3], 256, 256, 16
    $region17: #{tpu_custom_call.1} parent=1 // pred_fallthru
      _
    // Predicated region
    $region18: #{tpu_custom_call.1} parent=1 // pred_check
      _
    $region19: #{tpu_custom_call.1} parent=1 // pred_check_branch
      %306 = sbr.rel (0) target = $region21
    $region20: #{tpu_custom_call.1} parent=1 // pred_region
      %307 = dma.done [#allocation3], 4096
    $region21: #{tpu_custom_call.1} parent=1 // pred_fallthru
      _
    %308 = vsyncpa [#allocation3], 1

</llo_original>
